<compile_context>
chip_gen: v7x
topology: tpu7x:2x2x1
jax: 0.10.0
libtpu: 0.0.40
codegen_flags: <defaults>
</compile_context>

<pallas_src>
import functools

import jax
import jax.numpy as jnp
from jax.experimental import pallas as pl
from jax.experimental.pallas import tpu as pltpu

LANE = 128
SUBLANE = 8


def _round_up(n, m):
    return ((n + m - 1) // m) * m


def make_mlp_kernel(num_hidden: int, apply_bn: bool, batch: int, eps: float = 1e-5):
    """Fused MLP kernel.

    Refs:
      x_ref  : (B, K0p)             bf16  unpadded/min-padded input activations
      w0_ref : (K0p, Fp)            bf16  first-layer weight (real contraction K)
      w_ref  : (num_hidden, Fp, Fp) bf16  hidden layers 2..L + output layer
      v_ref  : (Rp, Fp)             f32   packed rows: [b, gamma, beta]*L + [b_out]
      o_ref  : (B, Fp)              f32   lane-dense padded output slab
    """
    assert num_hidden >= 1
    inv_b = 1.0 / float(batch)

    def _bn(h, g, be):
        # Training-mode batch stats folded to one per-feature scale/shift.
        mu = jnp.sum(h, axis=0, keepdims=True) * inv_b
        var = jnp.sum(h * h, axis=0, keepdims=True) * inv_b - mu * mu
        var = jnp.maximum(var, 0.0)                 # guard f32 cancellation
        scale = g * jax.lax.rsqrt(var + eps)        # EUP slot
        shift = be - mu * scale
        # Padded lanes stay exactly 0 because gamma/beta are zero-padded
        # (scale = 0, shift = 0) -- see pack_params().
        return h * scale + shift

    def kernel(x_ref, w0_ref, w_ref, v_ref, o_ref):
        # --- first hidden layer: real K (no 128-wide contraction padding) ---
        h = jnp.dot(x_ref[...], w0_ref[...],
                    preferred_element_type=jnp.float32) + v_ref[0:1]
        h = jnp.maximum(h, 0.0)
        if apply_bn:
            h = _bn(h, v_ref[1:2], v_ref[2:3])
        # Dropout -> identity (see TODO at top of file).

        # --- remaining hidden layers ---
        row = 3
        for li in range(1, num_hidden):
            h = jnp.dot(h.astype(jnp.bfloat16), w_ref[li - 1],
                        preferred_element_type=jnp.float32) + v_ref[row:row + 1]
            h = jnp.maximum(h, 0.0)
            if apply_bn:
                h = _bn(h, v_ref[row + 1:row + 2], v_ref[row + 2:row + 3])
            row += 3

        # --- output Linear ---
        out = jnp.dot(h.astype(jnp.bfloat16), w_ref[num_hidden - 1],
                      preferred_element_type=jnp.float32) + v_ref[row:row + 1]
        o_ref[...] = out.astype(o_ref.dtype)

    return kernel


def init_params(key, input_size, hidden_sizes, output_size):
    """PyTorch-style (uniform +-1/sqrt(fan_in)) init.

    Returns flat list [W_i, b_i, gamma_i, beta_i]*L + [W_out, b_out],
    W stored as (in_features, out_features), all f32, UNpadded.
    """
    params = []
    prev = input_size
    for h in hidden_sizes:
        key, kw, kb = jax.random.split(key, 3)
        bound = 1.0 / jnp.sqrt(jnp.float32(prev))
        w = jax.random.uniform(kw, (prev, h), jnp.float32, -bound, bound)
        b = jax.random.uniform(kb, (1, h), jnp.float32, -bound, bound)
        params += [w, b, jnp.ones((1, h), jnp.float32), jnp.zeros((1, h), jnp.float32)]
        prev = h
    key, kw, kb = jax.random.split(key, 3)
    bound = 1.0 / jnp.sqrt(jnp.float32(prev))
    w = jax.random.uniform(kw, (prev, output_size), jnp.float32, -bound, bound)
    b = jax.random.uniform(kb, (1, output_size), jnp.float32, -bound, bound)
    params += [w, b]
    return params


def pack_params(params, input_size, hidden_sizes, output_size):
    """Pack layers into: first-layer weight (real K), a bf16 weight slab for the
    rest, and one f32 vector slab.

    NOTE: padded lanes of gamma/beta MUST stay zero. With gamma=0/beta=0 the
    BN scale/shift on padded lanes are exactly 0, so padded lanes remain 0
    through every layer (padding with ones would explode via rsqrt(eps)).
    """
    L = len(hidden_sizes)
    assert L >= 1
    dims = [input_size] + list(hidden_sizes) + [output_size]
    Fp = max(_round_up(d, LANE) for d in dims[1:])      # hidden/output lane width
    K0p = _round_up(input_size, 16)                     # bf16 sublane packing
    rows = _round_up(3 * L + 1, SUBLANE)

    w0_slab = jnp.zeros((K0p, Fp), jnp.bfloat16)
    w_slab = jnp.zeros((L, Fp, Fp), jnp.bfloat16)       # hidden 2..L + output
    v_slab = jnp.zeros((rows, Fp), jnp.float32)

    idx, row, prev = 0, 0, input_size
    for li, hs in enumerate(hidden_sizes):
        w, b, g, be = params[idx:idx + 4]
        idx += 4
        if li == 0:
            w0_slab = w0_slab.at[:prev, :hs].set(w.astype(jnp.bfloat16))
        else:
            w_slab = w_slab.at[li - 1, :prev, :hs].set(w.astype(jnp.bfloat16))
        v_slab = v_slab.at[row, :hs].set(b.reshape(-1))
        v_slab = v_slab.at[row + 1, :hs].set(g.reshape(-1))
        v_slab = v_slab.at[row + 2, :hs].set(be.reshape(-1))
        row += 3
        prev = hs
    w, b = params[idx], params[idx + 1]
    w_slab = w_slab.at[L - 1, :prev, :output_size].set(w.astype(jnp.bfloat16))
    v_slab = v_slab.at[row, :output_size].set(b.reshape(-1))
    return w0_slab, w_slab, v_slab


@functools.partial(jax.jit, static_argnames=("num_hidden", "output_size", "dims"))
def _run(num_hidden, output_size, dims, x, w0_slab, w_slab, v_slab):
    B, F = x.shape
    K0p = w0_slab.shape[0]
    Fp = w_slab.shape[-1]

    # No (B, 128) wrapper-side pad: pass x at its real width (bf16 halves the DMA).
    xb = x.astype(jnp.bfloat16)
    if F != K0p:  # only if input_size is not already 16-aligned (no-op here)
        xb = jnp.pad(xb, ((0, 0), (0, K0p - F)))

    apply_bn = B > 1  # matches `if BatchNorm1d and x.size(0) == 1: continue`
    kernel = make_mlp_kernel(num_hidden, apply_bn, B)

    # Realistic cost estimate (real layer dims, not padded Fp^2).
    flops = 2 * B * sum(dims[i] * dims[i + 1] for i in range(len(dims) - 1))
    transcendentals = sum(dims[1:-1]) if apply_bn else 0
    bytes_accessed = (xb.size * 2 + w0_slab.size * 2 + w_slab.size * 2
                      + v_slab.size * 4 + B * Fp * 4)

    out_pad = pl.pallas_call(
        kernel,
        out_shape=jax.ShapeDtypeStruct((B, Fp), jnp.float32),
        in_specs=[pl.BlockSpec(memory_space=pltpu.MemorySpace.VMEM)] * 4,
        out_specs=pl.BlockSpec(memory_space=pltpu.MemorySpace.VMEM),
        cost_estimate=pl.CostEstimate(flops=flops,
                                      transcendentals=transcendentals,
                                      bytes_accessed=bytes_accessed),
    )(xb, w0_slab, w_slab, v_slab)
    return out_pad[:, :output_size]


def mlp_forward(x, w0_slab, w_slab, v_slab, num_hidden, output_size, dims):
    return _run(num_hidden, output_size, tuple(dims), x, w0_slab, w_slab, v_slab)


def reference_forward(x, params, num_hidden, eps=1e-5):
    """Pure-JAX reference (same bf16-weight / f32-accumulate precision policy)."""
    h = x.astype(jnp.float32)
    idx = 0
    apply_bn = x.shape[0] > 1
    for _ in range(num_hidden):
        w, b, g, be = params[idx:idx + 4]
        idx += 4
        h = jnp.dot(h.astype(jnp.bfloat16), w.astype(jnp.bfloat16),
                    preferred_element_type=jnp.float32) + b
        h = jnp.maximum(h, 0.0)
        if apply_bn:
            mu = jnp.mean(h, axis=0, keepdims=True)
            var = jnp.maximum(jnp.mean(h * h, axis=0, keepdims=True) - mu * mu, 0.0)
            h = g * (h - mu) * jax.lax.rsqrt(var + eps) + be
    w, b = params[idx], params[idx + 1]
    return jnp.dot(h.astype(jnp.bfloat16), w.astype(jnp.bfloat16),
                   preferred_element_type=jnp.float32) + b


if __name__ == "__main__":
    # Small shapes consistent with the module: batch=8, input=16, hidden=[32,32], output=4.
    input_size, hidden_sizes, output_size, batch = 16, [32, 32], 4, 8
    dims = [input_size] + hidden_sizes + [output_size]

    key = jax.random.PRNGKey(0)
    key, kx = jax.random.split(key)
    x = jax.random.normal(kx, (batch, input_size), jnp.float32)

    params = init_params(key, input_size, hidden_sizes, output_size)
    w0_slab, w_slab, v_slab = pack_params(params, input_size, hidden_sizes, output_size)

    out = mlp_forward(x, w0_slab, w_slab, v_slab,
                      num_hidden=len(hidden_sizes), output_size=output_size, dims=dims)
    out = jax.block_until_ready(out)

    ref = reference_forward(x, params, num_hidden=len(hidden_sizes))
    assert out.shape == (batch, output_size)
    # Tolerance relaxed slightly vs. pure-f32 because the MXU inputs are bf16
    # (accumulation stays f32); reference uses the matching precision policy.
    assert jnp.allclose(out, ref, atol=2e-2, rtol=2e-2), "mismatch vs pure-JAX reference"

    print("KERNEL_OK")
</pallas_src>

<mosaic_0001>
module attributes {stable_mosaic.version = 11 : i64} {
  func.func @kernel(%arg0: memref<8x16xbf16, #tpu.memory_space<vmem>>, %arg1: memref<16x128xbf16, #tpu.memory_space<vmem>>, %arg2: memref<2x128x128xbf16, #tpu.memory_space<vmem>>, %arg3: memref<8x128xf32, #tpu.memory_space<vmem>>, %arg4: memref<8x128xf32, #tpu.memory_space<vmem>>) attributes {dimension_semantics = [], scalar_prefetch = 0 : i64, scratch_operands = 0 : i64, tpu.core_type = #tpu.core_type<tc>} {
    %c0 = arith.constant 0 : index
    %c0_0 = arith.constant 0 : index
    %0 = vector.load %arg0[%c0, %c0_0] : memref<8x16xbf16, #tpu.memory_space<vmem>>, vector<8x16xbf16>
    %c0_1 = arith.constant 0 : index
    %c0_2 = arith.constant 0 : index
    %1 = vector.load %arg1[%c0_1, %c0_2] : memref<16x128xbf16, #tpu.memory_space<vmem>>, vector<16x128xbf16>
    %cst = arith.constant dense<0.000000e+00> : vector<8x128xf32>
    %2 = tpu.matmul %0, %1, %cst {dimension_numbers = #tpu.dot_dimension_numbers<[1], [0], [0], [1], [0, 0, 1, 1], [], []>} : vector<8x16xbf16>, vector<16x128xbf16>, vector<8x128xf32> -> vector<8x128xf32>
    %c0_3 = arith.constant 0 : index
    %c0_4 = arith.constant 0 : index
    %3 = vector.load %arg3[%c0_3, %c0_4] : memref<8x128xf32, #tpu.memory_space<vmem>>, vector<1x128xf32>
    %4 = vector.broadcast %3 : vector<1x128xf32> to vector<8x128xf32>
    %5 = arith.addf %2, %4 : vector<8x128xf32>
    %cst_5 = arith.constant 0.000000e+00 : f32
    %6 = vector.broadcast %cst_5 : f32 to vector<8x128xf32>
    %7 = arith.maximumf %5, %6 : vector<8x128xf32>
    %c1 = arith.constant 1 : index
    %c0_6 = arith.constant 0 : index
    %8 = vector.load %arg3[%c1, %c0_6] : memref<8x128xf32, #tpu.memory_space<vmem>>, vector<1x128xf32>
    %c2 = arith.constant 2 : index
    %c0_7 = arith.constant 0 : index
    %9 = vector.load %arg3[%c2, %c0_7] : memref<8x128xf32, #tpu.memory_space<vmem>>, vector<1x128xf32>
    %cst_8 = arith.constant dense<0.000000e+00> : vector<128xf32>
    %10 = vector.multi_reduction <add>, %7, %cst_8 [0] : vector<8x128xf32> to vector<128xf32>
    %11 = vector.shape_cast %10 : vector<128xf32> to vector<1x128xf32>
    %cst_9 = arith.constant 1.250000e-01 : f32
    %12 = vector.broadcast %cst_9 : f32 to vector<1x128xf32>
    %13 = arith.mulf %11, %12 : vector<1x128xf32>
    %14 = arith.mulf %7, %7 : vector<8x128xf32>
    %cst_10 = arith.constant dense<0.000000e+00> : vector<128xf32>
    %15 = vector.multi_reduction <add>, %14, %cst_10 [0] : vector<8x128xf32> to vector<128xf32>
    %16 = vector.shape_cast %15 : vector<128xf32> to vector<1x128xf32>
    %cst_11 = arith.constant 1.250000e-01 : f32
    %17 = vector.broadcast %cst_11 : f32 to vector<1x128xf32>
    %18 = arith.mulf %16, %17 : vector<1x128xf32>
    %19 = arith.mulf %13, %13 : vector<1x128xf32>
    %20 = arith.subf %18, %19 : vector<1x128xf32>
    %cst_12 = arith.constant 0.000000e+00 : f32
    %21 = vector.broadcast %cst_12 : f32 to vector<1x128xf32>
    %22 = arith.maximumf %20, %21 : vector<1x128xf32>
    %cst_13 = arith.constant 9.99999974E-6 : f32
    %23 = vector.broadcast %cst_13 : f32 to vector<1x128xf32>
    %24 = arith.addf %22, %23 : vector<1x128xf32>
    %25 = math.rsqrt %24 : vector<1x128xf32>
    %26 = arith.mulf %8, %25 : vector<1x128xf32>
    %27 = arith.mulf %13, %26 : vector<1x128xf32>
    %28 = arith.subf %9, %27 : vector<1x128xf32>
    %29 = vector.broadcast %26 : vector<1x128xf32> to vector<8x128xf32>
    %30 = arith.mulf %7, %29 : vector<8x128xf32>
    %31 = vector.broadcast %28 : vector<1x128xf32> to vector<8x128xf32>
    %32 = arith.addf %30, %31 : vector<8x128xf32>
    %33 = arith.truncf %32 : vector<8x128xf32> to vector<8x128xbf16>
    %c0_14 = arith.constant 0 : index
    %c0_15 = arith.constant 0 : index
    %c0_16 = arith.constant 0 : index
    %34 = vector.load %arg2[%c0_14, %c0_15, %c0_16] : memref<2x128x128xbf16, #tpu.memory_space<vmem>>, vector<1x128x128xbf16>
    %35 = vector.shape_cast %34 : vector<1x128x128xbf16> to vector<128x128xbf16>
    %cst_17 = arith.constant dense<0.000000e+00> : vector<8x128xf32>
    %36 = tpu.matmul %33, %35, %cst_17 {dimension_numbers = #tpu.dot_dimension_numbers<[1], [0], [0], [1], [0, 0, 1, 1], [], []>} : vector<8x128xbf16>, vector<128x128xbf16>, vector<8x128xf32> -> vector<8x128xf32>
    %c3 = arith.constant 3 : index
    %c0_18 = arith.constant 0 : index
    %37 = vector.load %arg3[%c3, %c0_18] : memref<8x128xf32, #tpu.memory_space<vmem>>, vector<1x128xf32>
    %38 = vector.broadcast %37 : vector<1x128xf32> to vector<8x128xf32>
    %39 = arith.addf %36, %38 : vector<8x128xf32>
    %cst_19 = arith.constant 0.000000e+00 : f32
    %40 = vector.broadcast %cst_19 : f32 to vector<8x128xf32>
    %41 = arith.maximumf %39, %40 : vector<8x128xf32>
    %c4 = arith.constant 4 : index
    %c0_20 = arith.constant 0 : index
    %42 = vector.load %arg3[%c4, %c0_20] : memref<8x128xf32, #tpu.memory_space<vmem>>, vector<1x128xf32>
    %c5 = arith.constant 5 : index
    %c0_21 = arith.constant 0 : index
    %43 = vector.load %arg3[%c5, %c0_21] : memref<8x128xf32, #tpu.memory_space<vmem>>, vector<1x128xf32>
    %cst_22 = arith.constant dense<0.000000e+00> : vector<128xf32>
    %44 = vector.multi_reduction <add>, %41, %cst_22 [0] : vector<8x128xf32> to vector<128xf32>
    %45 = vector.shape_cast %44 : vector<128xf32> to vector<1x128xf32>
    %cst_23 = arith.constant 1.250000e-01 : f32
    %46 = vector.broadcast %cst_23 : f32 to vector<1x128xf32>
    %47 = arith.mulf %45, %46 : vector<1x128xf32>
    %48 = arith.mulf %41, %41 : vector<8x128xf32>
    %cst_24 = arith.constant dense<0.000000e+00> : vector<128xf32>
    %49 = vector.multi_reduction <add>, %48, %cst_24 [0] : vector<8x128xf32> to vector<128xf32>
    %50 = vector.shape_cast %49 : vector<128xf32> to vector<1x128xf32>
    %cst_25 = arith.constant 1.250000e-01 : f32
    %51 = vector.broadcast %cst_25 : f32 to vector<1x128xf32>
    %52 = arith.mulf %50, %51 : vector<1x128xf32>
    %53 = arith.mulf %47, %47 : vector<1x128xf32>
    %54 = arith.subf %52, %53 : vector<1x128xf32>
    %cst_26 = arith.constant 0.000000e+00 : f32
    %55 = vector.broadcast %cst_26 : f32 to vector<1x128xf32>
    %56 = arith.maximumf %54, %55 : vector<1x128xf32>
    %cst_27 = arith.constant 9.99999974E-6 : f32
    %57 = vector.broadcast %cst_27 : f32 to vector<1x128xf32>
    %58 = arith.addf %56, %57 : vector<1x128xf32>
    %59 = math.rsqrt %58 : vector<1x128xf32>
    %60 = arith.mulf %42, %59 : vector<1x128xf32>
    %61 = arith.mulf %47, %60 : vector<1x128xf32>
    %62 = arith.subf %43, %61 : vector<1x128xf32>
    %63 = vector.broadcast %60 : vector<1x128xf32> to vector<8x128xf32>
    %64 = arith.mulf %41, %63 : vector<8x128xf32>
    %65 = vector.broadcast %62 : vector<1x128xf32> to vector<8x128xf32>
    %66 = arith.addf %64, %65 : vector<8x128xf32>
    %67 = arith.truncf %66 : vector<8x128xf32> to vector<8x128xbf16>
    %c1_28 = arith.constant 1 : index
    %c0_29 = arith.constant 0 : index
    %c0_30 = arith.constant 0 : index
    %68 = vector.load %arg2[%c1_28, %c0_29, %c0_30] : memref<2x128x128xbf16, #tpu.memory_space<vmem>>, vector<1x128x128xbf16>
    %69 = vector.shape_cast %68 : vector<1x128x128xbf16> to vector<128x128xbf16>
    %cst_31 = arith.constant dense<0.000000e+00> : vector<8x128xf32>
    %70 = tpu.matmul %67, %69, %cst_31 {dimension_numbers = #tpu.dot_dimension_numbers<[1], [0], [0], [1], [0, 0, 1, 1], [], []>} : vector<8x128xbf16>, vector<128x128xbf16>, vector<8x128xf32> -> vector<8x128xf32>
    %c6 = arith.constant 6 : index
    %c0_32 = arith.constant 0 : index
    %71 = vector.load %arg3[%c6, %c0_32] : memref<8x128xf32, #tpu.memory_space<vmem>>, vector<1x128xf32>
    %72 = vector.broadcast %71 : vector<1x128xf32> to vector<8x128xf32>
    %73 = arith.addf %70, %72 : vector<8x128xf32>
    %c0_33 = arith.constant 0 : index
    %c0_34 = arith.constant 0 : index
    %74 = vector.load %arg4[%c0_33, %c0_34] : memref<8x128xf32, #tpu.memory_space<vmem>>, vector<8x128xf32>
    tpu.vector_store %arg4[%c0_33, %c0_34], %73 {strides = array<i32>} : memref<8x128xf32, #tpu.memory_space<vmem>>, vector<8x128xf32>,
    return
  }
}

</mosaic_0001>

<llo_original>
// kernel: _run.1
$region0: #{_run.1}
  #allocation0 [shape = 'u32[]', space=smem, size = 0x4, offset = 0x4, fixed_abs, tag = 'smem constant byte address 0x4 - core index']
  #allocation1 [shape = 'u32[144,128]{1,0:T(1,128)}', space=vmem, size = 0x12000, scoped, tag = 'internal scratch']
  %s0 = inlined_call_operand.vmem [shape: bf16[8,16], index: 0, kind: input, shape index: {}]
  %s1 = inlined_call_operand.vmem [shape: bf16[16,128], index: 1, kind: input, shape index: {}]
  %s2 = inlined_call_operand.hbm [shape: bf16[2,128,128], index: 2, kind: input, shape index: {}]
  %s3 = inlined_call_operand.vmem [shape: f32[8,128], index: 3, kind: input, shape index: {}]
  %s4 = inlined_call_operand.vmem [shape: f32[8,128], index: 4, kind: output, shape index: {}]
  %s5 = sld [smem:[#allocation0]]
  $region30: #{_run.1} parent=0
    _
  %s7 = ssub.s32 1, %s5
  %s8 = scalar_select 0, %s7, %s5
  $region1: #{_run.1} parent=0
    #allocation2 [shape = 'u8[65536]{0}', space=vmem, size = 0x10000, scoped, tag = 'input window, operand 2, single buffered']
    #allocation3 [shape = 's32[1]{0}', space=sflag, size = 0x4, scoped, tag = 'scoped memory for _run.1']
    %9 = vsyncpa [#allocation3], 0
    // Predicated region
    $region2: #{_run.1} parent=1 // pred_check
      _
    $region3: #{_run.1} parent=1 // pred_check_branch
      %11 = sbr.rel (0) target = $region5
    $region4: #{_run.1} parent=1 // pred_region
      _
    $region5: #{_run.1} parent=1 // pred_fallthru
      _
    // Predicated region
    $region6: #{_run.1} parent=1 // pred_check
      _
    $region7: #{_run.1} parent=1 // pred_check_branch
      %13 = sbr.rel (0) target = $region9
    $region8: #{_run.1} parent=1 // pred_region
      _
    $region9: #{_run.1} parent=1 // pred_fallthru
      _
    // Predicated region
    $region10: #{_run.1} parent=1 // pred_check
      _
    $region11: #{_run.1} parent=1 // pred_check_branch
      %15 = sbr.rel (0) target = $region13
    $region12: #{_run.1} parent=1 // pred_region
      %s17 = ssub.s32 2048, 2048
      %18 = vsyncadd [#allocation3], %s17
      %s19 = sshll.u32 [#allocation2], 4
      %s20 = int_to_ptr.vmem [resolvable:$true] %s19
      %25 = dma.hbm_to_vmem [thread:$0]  %s2, 2048, %s20, [#allocation3], 64, 64, 4
    $region13: #{_run.1} parent=1 // pred_fallthru
      _
    // Predicated region
    $region14: #{_run.1} parent=1 // pred_check
      _
    $region15: #{_run.1} parent=1 // pred_check_branch
      %27 = sbr.rel (0) target = $region17
    $region16: #{_run.1} parent=1 // pred_region
      _
    $region17: #{_run.1} parent=1 // pred_fallthru
      _
    // Predicated region
    $region18: #{_run.1} parent=1 // pred_check
      _
    $region19: #{_run.1} parent=1 // pred_check_branch
      %29 = sbr.rel (0) target = $region21
    $region20: #{_run.1} parent=1 // pred_region
      %30 = dma.done [#allocation3], 2048
    $region21: #{_run.1} parent=1 // pred_fallthru
      _
    %v32 = vld [vmem:[%s0] sm:$0xf]
    %v33 = vld [vmem:[%s1] sm:$0xf]
    %v34 = vld [vmem:[%s1 + $0x4] sm:$0xf]
    %v35 = vld [vmem:[%s3] sm:$0x1]
    %v36 = vlaneseq
    %v37 = vshrl.u32 %v36, 7
    %v38 = vsub.s32 0, %v37
    %v39 = vrot.slane %v35, %v38
    %v42 = vunpack.c.l.b16 %v33
    %v43 = vunpack.c.l.b16 %v34
    %v44 = vpack.c.b16 %v43, %v42
    %vm46 = vcmask 130048
    %v48 = vsel %vm46, %v32, 0
    %50 = vmatprep.subr.bf16.mxu0 0
    %51 = vmatpush1.bf16.msra.mxu0 %v44
    %52 = vmatprep.subr.bf16.mxu0 0
    %53 = vmatpush1.bf16.msra.mxu0 0
    %54 = vmatprep.subr.bf16.mxu0 0
    %55 = vmatpush1.bf16.msra.mxu0 0
    %56 = vmatprep.subr.bf16.mxu0 0
    %57 = vmatpush1.bf16.msra.mxu0 0
    %58 = vmatprep.subr.bf16.mxu0 0
    %59 = vmatpush1.bf16.msra.mxu0 0
    %60 = vmatprep.subr.bf16.mxu0 0
    %61 = vmatpush1.bf16.msra.mxu0 0
    %62 = vmatprep.subr.bf16.mxu0 0
    %63 = vmatpush1.bf16.msra.mxu0 0
    %64 = vmatprep.subr.bf16.mxu0 0
    %65 = vmatpush1.bf16.msra.mxu0 0
    %66 = vmatprep.subr.bf16.mxu0 0
    %67 = vmatpush1.bf16.msra.mxu0 0
    %68 = vmatprep.subr.bf16.mxu0 0
    %69 = vmatpush1.bf16.msra.mxu0 0
    %70 = vmatprep.subr.bf16.mxu0 0
    %71 = vmatpush1.bf16.msra.mxu0 0
    %72 = vmatprep.subr.bf16.mxu0 0
    %73 = vmatpush1.bf16.msra.mxu0 0
    %74 = vmatprep.subr.bf16.mxu0 0
    %75 = vmatpush1.bf16.msra.mxu0 0
    %76 = vmatprep.subr.bf16.mxu0 0
    %77 = vmatpush1.bf16.msra.mxu0 0
    %78 = vmatprep.subr.bf16.mxu0 0
    %79 = vmatpush1.bf16.msra.mxu0 0
    %80 = vmatprep.subr.bf16.mxu0 0
    %81 = vmatpush1.bf16.msra.mxu0 0
    %82 = vmatprep.mubr.bf16.mxu0 0
    %83 = vmatmul.mubr.bf16.gmra.mrb[0].mxu0 %v48
    %v84 = vpop.f32.mrb[0].mxu0
    %v85 = vadd.f32 %v39, %v84
    %v86 = vpop.f32.mrb[0].mxu0
    %v87 = vpop.f32.mrb[0].mxu0
    %v88 = vpop.f32.mrb[0].mxu0
    %89 = vdwg.mxu0
    %v90 = vmax.f32 %v85, 0.0
    %v91 = vld [vmem:[%s3 + $0x1] sm:$0x1]
    %v92 = vld [vmem:[%s3 + $0x2] sm:$0x1]
    %v93 = vrot.slane %v90, 4
    %v94 = vadd.f32 %v90, %v93
    %v95 = vrot.slane %v94, 2
    %v96 = vadd.f32 %v94, %v95
    %v97 = vrot.slane %v96, 1
    %v98 = vadd.f32 %v96, %v97
    %v99 = vmul.f32 %v98, 0.125
    %v100 = vmul.f32 %v90, %v90
    %v101 = vrot.slane %v100, 4
    %v102 = vadd.f32 %v100, %v101
    %v103 = vrot.slane %v102, 2
    %v104 = vadd.f32 %v102, %v103
    %v105 = vrot.slane %v104, 1
    %v106 = vadd.f32 %v104, %v105
    %v107 = vmul.f32 %v106, 0.125
    %v108 = vmul.f32 %v99, %v99
    %v109 = vsub.f32 %v107, %v108
    %v110 = vmax.f32 %v109, 0.0
    %v111 = vadd.f32 %v110, 1e-05
    %v112 = vrsqrt.pop %v111
    %v113 = vmul.f32 %v91, %v112
    %v114 = vmul.f32 %v99, %v113
    %v115 = vsub.f32 %v92, %v114
    %v116 = vlaneseq
    %v117 = vshrl.u32 %v116, 7
    %v118 = vsub.s32 0, %v117
    %v119 = vrot.slane %v113, %v118
    %v120 = vmul.f32 %v90, %v119
    %v121 = vlaneseq
    %v122 = vshrl.u32 %v121, 7
    %v123 = vsub.s32 0, %v122
    %v124 = vrot.slane %v115, %v123
    %v125 = vadd.f32 %v120, %v124
    %v126 = vpack.c.bf16 %v125, %v125
    %v127 = vld [vmem:[#allocation2] sm:$0xf]
    %v128 = vld [vmem:[#allocation2 + $0x4] sm:$0xf]
    %v129 = vld [vmem:[#allocation2 + $0x8] sm:$0xf]
    %v130 = vld [vmem:[#allocation2 + $0xc] sm:$0xf]
    %v131 = vld [vmem:[#allocation2 + $0x10] sm:$0xf]
    %v132 = vld [vmem:[#allocation2 + $0x14] sm:$0xf]
    %v133 = vld [vmem:[#allocation2 + $0x18] sm:$0xf]
    %v134 = vld [vmem:[#allocation2 + $0x1c] sm:$0xf]
    %v135 = vld [vmem:[#allocation2 + $0x20] sm:$0xf]
    %v136 = vld [vmem:[#allocation2 + $0x24] sm:$0xf]
    %v137 = vld [vmem:[#allocation2 + $0x28] sm:$0xf]
    %v138 = vld [vmem:[#allocation2 + $0x2c] sm:$0xf]
    %v139 = vld [vmem:[#allocation2 + $0x30] sm:$0xf]
    %v140 = vld [vmem:[#allocation2 + $0x34] sm:$0xf]
    %v141 = vld [vmem:[#allocation2 + $0x38] sm:$0xf]
    %v142 = vld [vmem:[#allocation2 + $0x3c] sm:$0xf]
    %v143 = vld [vmem:[%s3 + $0x3] sm:$0x1]
    %v144 = vlaneseq
    %v145 = vshrl.u32 %v144, 7
    %v146 = vsub.s32 0, %v145
    %v147 = vrot.slane %v143, %v146
    %v164 = vunpack.c.l.b16 %v127
    %v165 = vunpack.c.l.b16 %v128
    %v166 = vunpack.c.l.b16 %v129
    %v167 = vunpack.c.l.b16 %v130
    %v168 = vunpack.c.l.b16 %v131
    %v169 = vunpack.c.l.b16 %v132
    %v170 = vunpack.c.l.b16 %v133
    %v171 = vunpack.c.l.b16 %v134
    %v172 = vunpack.c.l.b16 %v135
    %v173 = vunpack.c.l.b16 %v136
    %v174 = vunpack.c.l.b16 %v137
    %v175 = vunpack.c.l.b16 %v138
    %v176 = vunpack.c.l.b16 %v139
    %v177 = vunpack.c.l.b16 %v140
    %v178 = vunpack.c.l.b16 %v141
    %v179 = vunpack.c.l.b16 %v142
    %v180 = vpack.c.b16 %v165, %v164
    %v181 = vpack.c.b16 %v167, %v166
    %v182 = vpack.c.b16 %v169, %v168
    %v183 = vpack.c.b16 %v171, %v170
    %v184 = vpack.c.b16 %v173, %v172
    %v185 = vpack.c.b16 %v175, %v174
    %v186 = vpack.c.b16 %v177, %v176
    %v187 = vpack.c.b16 %v179, %v178
    %196 = vmatprep.subr.bf16.mxu0 0
    %197 = vmatpush1.bf16.msra.mxu0 %v180
    %198 = vmatprep.subr.bf16.mxu0 0
    %199 = vmatpush1.bf16.msra.mxu0 %v181
    %200 = vmatprep.subr.bf16.mxu0 0
    %201 = vmatpush1.bf16.msra.mxu0 %v182
    %202 = vmatprep.subr.bf16.mxu0 0
    %203 = vmatpush1.bf16.msra.mxu0 %v183
    %204 = vmatprep.subr.bf16.mxu0 0
    %205 = vmatpush1.bf16.msra.mxu0 %v184
    %206 = vmatprep.subr.bf16.mxu0 0
    %207 = vmatpush1.bf16.msra.mxu0 %v185
    %208 = vmatprep.subr.bf16.mxu0 0
    %209 = vmatpush1.bf16.msra.mxu0 %v186
    %210 = vmatprep.subr.bf16.mxu0 0
    %211 = vmatpush1.bf16.msra.mxu0 %v187
    %212 = vmatprep.subr.bf16.mxu0 0
    %213 = vmatpush1.bf16.msra.mxu0 0
    %214 = vmatprep.subr.bf16.mxu0 0
    %215 = vmatpush1.bf16.msra.mxu0 0
    %216 = vmatprep.subr.bf16.mxu0 0
    %217 = vmatpush1.bf16.msra.mxu0 0
    %218 = vmatprep.subr.bf16.mxu0 0
    %219 = vmatpush1.bf16.msra.mxu0 0
    %220 = vmatprep.subr.bf16.mxu0 0
    %221 = vmatpush1.bf16.msra.mxu0 0
    %222 = vmatprep.subr.bf16.mxu0 0
    %223 = vmatpush1.bf16.msra.mxu0 0
    %224 = vmatprep.subr.bf16.mxu0 0
    %225 = vmatpush1.bf16.msra.mxu0 0
    %226 = vmatprep.subr.bf16.mxu0 0
    %227 = vmatpush1.bf16.msra.mxu0 0
    %228 = vmatprep.mubr.bf16.mxu0 0
    %229 = vmatmul.mubr.bf16.gmra.mrb[0].mxu0 %v126
    %v230 = vpop.f32.mrb[0].mxu0
    %v231 = vadd.f32 %v147, %v230
    %v232 = vpop.f32.mrb[0].mxu0
    %v233 = vpop.f32.mrb[0].mxu0
    %v234 = vpop.f32.mrb[0].mxu0
    %235 = vdwg.mxu0
    %v236 = vmax.f32 %v231, 0.0
    %v237 = vld [vmem:[%s3 + $0x4] sm:$0x1]
    %v238 = vld [vmem:[%s3 + $0x5] sm:$0x1]
    %v239 = vrot.slane %v236, 4
    %v240 = vadd.f32 %v236, %v239
    %v241 = vrot.slane %v240, 2
    %v242 = vadd.f32 %v240, %v241
    %v243 = vrot.slane %v242, 1
    %v244 = vadd.f32 %v242, %v243
    %v245 = vmul.f32 %v244, 0.125
    %v246 = vmul.f32 %v236, %v236
    %v247 = vrot.slane %v246, 4
    %v248 = vadd.f32 %v246, %v247
    %v249 = vrot.slane %v248, 2
    %v250 = vadd.f32 %v248, %v249
    %v251 = vrot.slane %v250, 1
    %v252 = vadd.f32 %v250, %v251
    %v253 = vmul.f32 %v252, 0.125
    %v254 = vmul.f32 %v245, %v245
    %v255 = vsub.f32 %v253, %v254
    %v256 = vmax.f32 %v255, 0.0
    %v257 = vadd.f32 %v256, 1e-05
    %v258 = vrsqrt.pop %v257
    %v259 = vmul.f32 %v237, %v258
    %v260 = vmul.f32 %v245, %v259
    %v261 = vsub.f32 %v238, %v260
    %v262 = vlaneseq
    %v263 = vshrl.u32 %v262, 7
    %v264 = vsub.s32 0, %v263
    %v265 = vrot.slane %v259, %v264
    %v266 = vmul.f32 %v236, %v265
    %v267 = vlaneseq
    %v268 = vshrl.u32 %v267, 7
    %v269 = vsub.s32 0, %v268
    %v270 = vrot.slane %v261, %v269
    %v271 = vadd.f32 %v266, %v270
    %v272 = vpack.c.bf16 %v271, %v271
    %s273 = scalar_lea.vmem [#allocation2], 64
    %v274 = vld [vmem:[%s273] sm:$0xf]
    %v275 = vld [vmem:[%s273 + $0x4] sm:$0xf]
    %v276 = vld [vmem:[%s273 + $0x8] sm:$0xf]
    %v277 = vld [vmem:[%s273 + $0xc] sm:$0xf]
    %v278 = vld [vmem:[%s273 + $0x10] sm:$0xf]
    %v279 = vld [vmem:[%s273 + $0x14] sm:$0xf]
    %v280 = vld [vmem:[%s273 + $0x18] sm:$0xf]
    %v281 = vld [vmem:[%s273 + $0x1c] sm:$0xf]
    %v282 = vld [vmem:[%s273 + $0x20] sm:$0xf]
    %v283 = vld [vmem:[%s273 + $0x24] sm:$0xf]
    %v284 = vld [vmem:[%s273 + $0x28] sm:$0xf]
    %v285 = vld [vmem:[%s273 + $0x2c] sm:$0xf]
    %v286 = vld [vmem:[%s273 + $0x30] sm:$0xf]
    %v287 = vld [vmem:[%s273 + $0x34] sm:$0xf]
    %v288 = vld [vmem:[%s273 + $0x38] sm:$0xf]
    %v289 = vld [vmem:[%s273 + $0x3c] sm:$0xf]
    %v290 = vld [vmem:[%s3 + $0x6] sm:$0x1]
    %v291 = vlaneseq
    %v292 = vshrl.u32 %v291, 7
    %v293 = vsub.s32 0, %v292
    %v294 = vrot.slane %v290, %v293
    %v311 = vunpack.c.l.b16 %v274
    %v312 = vunpack.c.l.b16 %v275
    %v313 = vunpack.c.l.b16 %v276
    %v314 = vunpack.c.l.b16 %v277
    %v315 = vunpack.c.l.b16 %v278
    %v316 = vunpack.c.l.b16 %v279
    %v317 = vunpack.c.l.b16 %v280
    %v318 = vunpack.c.l.b16 %v281
    %v319 = vunpack.c.l.b16 %v282
    %v320 = vunpack.c.l.b16 %v283
    %v321 = vunpack.c.l.b16 %v284
    %v322 = vunpack.c.l.b16 %v285
    %v323 = vunpack.c.l.b16 %v286
    %v324 = vunpack.c.l.b16 %v287
    %v325 = vunpack.c.l.b16 %v288
    %v326 = vunpack.c.l.b16 %v289
    %v327 = vpack.c.b16 %v312, %v311
    %v328 = vpack.c.b16 %v314, %v313
    %v329 = vpack.c.b16 %v316, %v315
    %v330 = vpack.c.b16 %v318, %v317
    %v331 = vpack.c.b16 %v320, %v319
    %v332 = vpack.c.b16 %v322, %v321
    %v333 = vpack.c.b16 %v324, %v323
    %v334 = vpack.c.b16 %v326, %v325
    %343 = vmatprep.subr.bf16.mxu0 0
    %344 = vmatpush1.bf16.msra.mxu0 %v327
    %345 = vmatprep.subr.bf16.mxu0 0
    %346 = vmatpush1.bf16.msra.mxu0 %v328
    %347 = vmatprep.subr.bf16.mxu0 0
    %348 = vmatpush1.bf16.msra.mxu0 %v329
    %349 = vmatprep.subr.bf16.mxu0 0
    %350 = vmatpush1.bf16.msra.mxu0 %v330
    %351 = vmatprep.subr.bf16.mxu0 0
    %352 = vmatpush1.bf16.msra.mxu0 %v331
    %353 = vmatprep.subr.bf16.mxu0 0
    %354 = vmatpush1.bf16.msra.mxu0 %v332
    %355 = vmatprep.subr.bf16.mxu0 0
    %356 = vmatpush1.bf16.msra.mxu0 %v333
    %357 = vmatprep.subr.bf16.mxu0 0
    %358 = vmatpush1.bf16.msra.mxu0 %v334
    %359 = vmatprep.subr.bf16.mxu0 0
    %360 = vmatpush1.bf16.msra.mxu0 0
    %361 = vmatprep.subr.bf16.mxu0 0
    %362 = vmatpush1.bf16.msra.mxu0 0
    %363 = vmatprep.subr.bf16.mxu0 0
    %364 = vmatpush1.bf16.msra.mxu0 0
    %365 = vmatprep.subr.bf16.mxu0 0
    %366 = vmatpush1.bf16.msra.mxu0 0
    %367 = vmatprep.subr.bf16.mxu0 0
    %368 = vmatpush1.bf16.msra.mxu0 0
    %369 = vmatprep.subr.bf16.mxu0 0
    %370 = vmatpush1.bf16.msra.mxu0 0
    %371 = vmatprep.subr.bf16.mxu0 0
    %372 = vmatpush1.bf16.msra.mxu0 0
    %373 = vmatprep.subr.bf16.mxu0 0
    %374 = vmatpush1.bf16.msra.mxu0 0
    %375 = vmatprep.mubr.bf16.mxu0 0
    %376 = vmatmul.mubr.bf16.gmra.mrb[0].mxu0 %v272
    %v377 = vpop.f32.mrb[0].mxu0
    %v378 = vadd.f32 %v294, %v377
    %v379 = vpop.f32.mrb[0].mxu0
    %v380 = vpop.f32.mrb[0].mxu0
    %v381 = vpop.f32.mrb[0].mxu0
    %382 = vdwg.mxu0
    %383 = vst [vmem:[%s4] sm:$0xff] %v378
    // Predicated region
    $region22: #{_run.1} parent=1 // pred_check
      _
    $region23: #{_run.1} parent=1 // pred_check_branch
      %385 = sbr.rel (0) target = $region25
    $region24: #{_run.1} parent=1 // pred_region
      _
    $region25: #{_run.1} parent=1 // pred_fallthru
      _
    // Predicated region
    $region26: #{_run.1} parent=1 // pred_check
      _
    $region27: #{_run.1} parent=1 // pred_check_branch
      %387 = sbr.rel (0) target = $region29
    $region28: #{_run.1} parent=1 // pred_region
      _
    $region29: #{_run.1} parent=1 // pred_fallthru
      _
    %388 = vsyncpa [#allocation3], 1

</llo_original>
